<compile_context>
chip_gen: v6e
topology: v6e:2x2x1
jax: 0.10.0
libtpu: 0.0.40
codegen_flags: <defaults>
</compile_context>

<pallas_src>
import functools

import jax
import jax.numpy as jnp
from jax.experimental import pallas as pl
from jax.experimental.pallas import tpu as pltpu

_LANE = 128


def _group_norm_kernel(x_ref, w_ref, b_ref, o_ref, *, eps, inv_d, inv_dm1):
    # x_ref block: (k, gb, rows, 128); w_ref / b_ref block: (gb, rows, 128)
    x = x_ref[...].astype(jnp.float32)

    # Fused single-sweep statistics: sum and sum-of-squares.
    # Two-level reduction: sublane (rows) axis first, then the cross-lane step.
    s_row = jnp.sum(x, axis=2, keepdims=True)        # (k, gb, 1, 128)
    q_row = jnp.sum(x * x, axis=2, keepdims=True)    # (k, gb, 1, 128)
    s = jnp.sum(s_row, axis=3, keepdims=True)        # (k, gb, 1, 1)
    q = jnp.sum(q_row, axis=3, keepdims=True)        # (k, gb, 1, 1)

    mean = s * inv_d
    var = (q - s * mean) * inv_dm1                   # unbiased (torch .var())
    inv_std = jax.lax.rsqrt(var + eps)               # (k, gb, 1, 1)

    w = w_ref[...].astype(jnp.float32)[None]         # (1, gb, rows, 128)
    b = b_ref[...].astype(jnp.float32)[None]

    # Single fused writeback pass, one cast, lane-dense store.
    o_ref[...] = ((x - mean) * (w * inv_std) + b).astype(o_ref.dtype)


def _choose_block(N, G, slab_bytes, budget):
    """Largest (k samples, gb groups) block with k|N, gb|G under the budget."""
    gb = 1
    for cand in range(G, 0, -1):
        if G % cand == 0 and cand * slab_bytes <= budget:
            gb = cand
            break
    k = 1
    for cand in range(N, 0, -1):
        if N % cand == 0 and cand * gb * slab_bytes <= budget:
            k = cand
            break
    return k, gb


def group_norm_moving(x, weight, bias, *, num_groups, eps=1e-5,
                      block_budget_bytes=2 << 20):
    """Pallas implementation of GroupNormMoving.forward (first call, training).

    x:      (N, C, H, W) float
    weight: (1, C, 1, 1)
    bias:   (1, C, 1, 1)
    """
    N, C, H, W = x.shape
    G = num_groups
    assert C % G == 0, "Channel must be divided by groups"
    Cg = C // G
    HW = H * W
    D = Cg * HW
    assert D > 1, "group must contain >1 element for unbiased variance"

    Dp = ((D + _LANE - 1) // _LANE) * _LANE
    rows = Dp // _LANE

    # Lane-dense (rows, 128) group slabs (zero-padded; stats unaffected).
    xg = x.reshape(N, G, D)
    if Dp != D:
        xg = jnp.pad(xg, ((0, 0), (0, 0), (0, Dp - D)))
    x4 = xg.reshape(N, G, rows, _LANE)

    def expand(p):
        # per-channel param -> per-group, per-element slab matching x4 layout
        p2 = jnp.broadcast_to(p.reshape(G, Cg, 1), (G, Cg, HW)).reshape(G, D)
        if Dp != D:
            p2 = jnp.pad(p2, ((0, 0), (0, Dp - D)))
        return p2.reshape(G, rows, _LANE)

    w3 = expand(weight)
    b3 = expand(bias)

    itemsize = jnp.dtype(x.dtype).itemsize
    slab_bytes = rows * _LANE * itemsize
    k, gb = _choose_block(N, G, slab_bytes, block_budget_bytes)
    # TODO(synk): if a single (rows, 128) group slab ever exceeds the VMEM
    # budget (very large D on v7x's 64 MiB VMEM), add a spatially-tiled
    # two-pass variant with sum/sumsq scratch accumulators.

    blk_x = k * gb * slab_bytes
    blk_wb = gb * rows * _LANE * jnp.dtype(w3.dtype).itemsize
    vmem_need = 4 * blk_x + 4 * blk_wb + (4 << 20)          # 2x in + 2x out + w/b + slack
    vmem_limit = int(min(max(vmem_need, 16 << 20), 48 << 20))

    kernel = functools.partial(
        _group_norm_kernel,
        eps=float(eps),
        inv_d=1.0 / D,
        inv_dm1=1.0 / (D - 1),
    )

    out = pl.pallas_call(
        kernel,
        out_shape=jax.ShapeDtypeStruct((N, G, rows, _LANE), x.dtype),
        grid_spec=pltpu.PrefetchScalarGridSpec(
            num_scalar_prefetch=0,
            # group-blocks outer, sample-blocks inner: weight/bias block index
            # is invariant across the inner axis -> fetched once per group block.
            grid=(G // gb, N // k),
            in_specs=[
                pl.BlockSpec((k, gb, rows, _LANE), lambda j, i: (i, j, 0, 0)),
                pl.BlockSpec((gb, rows, _LANE), lambda j, i: (j, 0, 0)),
                pl.BlockSpec((gb, rows, _LANE), lambda j, i: (j, 0, 0)),
            ],
            out_specs=pl.BlockSpec((k, gb, rows, _LANE),
                                   lambda j, i: (i, j, 0, 0)),
        ),
        compiler_params=pltpu.CompilerParams(
            dimension_semantics=("parallel", "parallel"),
            vmem_limit_bytes=vmem_limit,
        ),
    )(x4, w3, b3)

    out = out.reshape(N, G, Dp)
    if Dp != D:
        out = out[..., :D]
    return out.reshape(N, C, H, W)


def _reference(x, weight, bias, *, num_groups, eps=1e-5):
    """Plain-JAX reference mirroring the PyTorch forward (first call)."""
    N, C, H, W = x.shape
    G = num_groups
    xg = x.reshape(N, G, -1)
    mean = jnp.mean(xg, axis=-1, keepdims=True)
    var = jnp.var(xg, axis=-1, keepdims=True, ddof=1)   # unbiased, torch .var()
    xn = ((xg - mean) / jnp.sqrt(var + eps)).reshape(N, C, H, W)
    return xn * weight + bias


def _run_case(key, *, N, C, H, W, G, **kw):
    kx, kp = jax.random.split(key)
    x = jax.random.normal(kx, (N, C, H, W), dtype=jnp.float32)
    # reset_parameters(): weight.uniform_(), bias.zero_()
    weight = jax.random.uniform(kp, (1, C, 1, 1), dtype=jnp.float32)
    bias = jnp.zeros((1, C, 1, 1), dtype=jnp.float32)

    out = jax.block_until_ready(
        group_norm_moving(x, weight, bias, num_groups=G, **kw))
    ref = _reference(x, weight, bias, num_groups=G)

    assert out.shape == (N, C, H, W)
    err = jnp.max(jnp.abs(out - ref))
    assert jnp.allclose(out, ref, atol=1e-4, rtol=1e-4), f"max abs err = {err}"


if __name__ == "__main__":
    key = jax.random.PRNGKey(0)
    k1, k2 = jax.random.split(key)

    # Lane-dense fast path: D = (C//G)*H*W = 4*256 = 1024 (multiple of 128).
    _run_case(k1, N=2, C=8, H=16, W=16, G=2)
    # Padded path (D = 72 -> 128) + multi-step grid (tiny budget forces tiling).
    _run_case(k2, N=2, C=4, H=6, W=6, G=2, block_budget_bytes=512)

    # TODO(synk): the running_mean/running_var EMA buffer update is a stateful
    # side effect; on the documented first call it is a no-op on the output, so
    # it is not modeled here.
    print("KERNEL_OK")
</pallas_src>

<mosaic_0001>
module attributes {stable_mosaic.version = 11 : i64} {
  func.func @_group_norm_kernel(%arg0: i32, %arg1: i32, %arg2: memref<2x2x8x128xf32, #tpu.memory_space<vmem>>, %arg3: memref<2x8x128xf32, #tpu.memory_space<vmem>>, %arg4: memref<2x8x128xf32, #tpu.memory_space<vmem>>, %arg5: memref<2x2x8x128xf32, #tpu.memory_space<vmem>>) attributes {dimension_semantics = [#tpu.dimension_semantics<parallel>, #tpu.dimension_semantics<parallel>], iteration_bounds = array<i64: 1, 1>, scalar_prefetch = 0 : i64, scratch_operands = 0 : i64, tpu.core_type = #tpu.core_type<tc>, window_params = [{transform_indices = @transform_0, window_bounds = array<i64: 2, 2, 8, 128>}, {transform_indices = @transform_1, window_bounds = array<i64: 2, 8, 128>}, {transform_indices = @transform_2, window_bounds = array<i64: 2, 8, 128>}, {transform_indices = @transform_3, window_bounds = array<i64: 2, 2, 8, 128>}]} {
    %c0 = arith.constant 0 : index
    %c0_0 = arith.constant 0 : index
    %c0_1 = arith.constant 0 : index
    %c0_2 = arith.constant 0 : index
    %0 = vector.load %arg2[%c0, %c0_0, %c0_1, %c0_2] : memref<2x2x8x128xf32, #tpu.memory_space<vmem>>, vector<2x2x8x128xf32>
    %cst = arith.constant dense<0.000000e+00> : vector<2x2x128xf32>
    %1 = vector.multi_reduction <add>, %0, %cst [2] : vector<2x2x8x128xf32> to vector<2x2x128xf32>
    %2 = vector.shape_cast %1 : vector<2x2x128xf32> to vector<2x2x1x128xf32>
    %3 = arith.mulf %0, %0 : vector<2x2x8x128xf32>
    %cst_3 = arith.constant dense<0.000000e+00> : vector<2x2x128xf32>
    %4 = vector.multi_reduction <add>, %3, %cst_3 [2] : vector<2x2x8x128xf32> to vector<2x2x128xf32>
    %5 = vector.shape_cast %4 : vector<2x2x128xf32> to vector<2x2x1x128xf32>
    %cst_4 = arith.constant dense<0.000000e+00> : vector<2x2x1xf32>
    %6 = vector.multi_reduction <add>, %2, %cst_4 [3] : vector<2x2x1x128xf32> to vector<2x2x1xf32>
    %7 = vector.shape_cast %6 : vector<2x2x1xf32> to vector<2x2x1x1xf32>
    %cst_5 = arith.constant dense<0.000000e+00> : vector<2x2x1xf32>
    %8 = vector.multi_reduction <add>, %5, %cst_5 [3] : vector<2x2x1x128xf32> to vector<2x2x1xf32>
    %9 = vector.shape_cast %8 : vector<2x2x1xf32> to vector<2x2x1x1xf32>
    %cst_6 = arith.constant 9.765625E-4 : f32
    %10 = vector.broadcast %cst_6 : f32 to vector<2x2x1x1xf32>
    %11 = arith.mulf %7, %10 : vector<2x2x1x1xf32>
    %12 = arith.mulf %7, %11 : vector<2x2x1x1xf32>
    %13 = arith.subf %9, %12 : vector<2x2x1x1xf32>
    %cst_7 = arith.constant 9.77517105E-4 : f32
    %14 = vector.broadcast %cst_7 : f32 to vector<2x2x1x1xf32>
    %15 = arith.mulf %13, %14 : vector<2x2x1x1xf32>
    %cst_8 = arith.constant 9.99999974E-6 : f32
    %16 = vector.broadcast %cst_8 : f32 to vector<2x2x1x1xf32>
    %17 = arith.addf %15, %16 : vector<2x2x1x1xf32>
    %18 = math.rsqrt %17 : vector<2x2x1x1xf32>
    %c0_9 = arith.constant 0 : index
    %c0_10 = arith.constant 0 : index
    %c0_11 = arith.constant 0 : index
    %19 = vector.load %arg3[%c0_9, %c0_10, %c0_11] : memref<2x8x128xf32, #tpu.memory_space<vmem>>, vector<2x8x128xf32>
    %20 = vector.shape_cast %19 : vector<2x8x128xf32> to vector<1x2x8x128xf32>
    %c0_12 = arith.constant 0 : index
    %c0_13 = arith.constant 0 : index
    %c0_14 = arith.constant 0 : index
    %21 = vector.load %arg4[%c0_12, %c0_13, %c0_14] : memref<2x8x128xf32, #tpu.memory_space<vmem>>, vector<2x8x128xf32>
    %22 = vector.shape_cast %21 : vector<2x8x128xf32> to vector<1x2x8x128xf32>
    %23 = vector.broadcast %11 : vector<2x2x1x1xf32> to vector<2x2x8x128xf32>
    %24 = arith.subf %0, %23 : vector<2x2x8x128xf32>
    %25 = vector.broadcast %20 : vector<1x2x8x128xf32> to vector<2x2x8x128xf32>
    %26 = vector.broadcast %18 : vector<2x2x1x1xf32> to vector<2x2x8x128xf32>
    %27 = arith.mulf %25, %26 : vector<2x2x8x128xf32>
    %28 = arith.mulf %24, %27 : vector<2x2x8x128xf32>
    %29 = vector.broadcast %22 : vector<1x2x8x128xf32> to vector<2x2x8x128xf32>
    %30 = arith.addf %28, %29 : vector<2x2x8x128xf32>
    %c0_15 = arith.constant 0 : index
    %c0_16 = arith.constant 0 : index
    %c0_17 = arith.constant 0 : index
    %c0_18 = arith.constant 0 : index
    %31 = vector.load %arg5[%c0_15, %c0_16, %c0_17, %c0_18] : memref<2x2x8x128xf32, #tpu.memory_space<vmem>>, vector<2x2x8x128xf32>
    tpu.vector_store %arg5[%c0_15, %c0_16, %c0_17, %c0_18], %30 {strides = array<i32>} : memref<2x2x8x128xf32, #tpu.memory_space<vmem>>, vector<2x2x8x128xf32>,
    return
  }
  func.func @transform_0(%arg0: i32, %arg1: i32) -> (i32, i32, i32, i32) {
    %c0_i32 = arith.constant 0 : i32
    %c0_i32_0 = arith.constant 0 : i32
    %c0_i32_1 = arith.constant 0 : i32
    return %arg1, %arg0, %c0_i32, %c0_i32_0 : i32, i32, i32, i32
  }
  func.func @transform_1(%arg0: i32, %arg1: i32) -> (i32, i32, i32) {
    %c0_i32 = arith.constant 0 : i32
    %c0_i32_0 = arith.constant 0 : i32
    %c0_i32_1 = arith.constant 0 : i32
    return %arg0, %c0_i32, %c0_i32_0 : i32, i32, i32
  }
  func.func @transform_2(%arg0: i32, %arg1: i32) -> (i32, i32, i32) {
    %c0_i32 = arith.constant 0 : i32
    %c0_i32_0 = arith.constant 0 : i32
    %c0_i32_1 = arith.constant 0 : i32
    return %arg0, %c0_i32, %c0_i32_0 : i32, i32, i32
  }
  func.func @transform_3(%arg0: i32, %arg1: i32) -> (i32, i32, i32, i32) {
    %c0_i32 = arith.constant 0 : i32
    %c0_i32_0 = arith.constant 0 : i32
    %c0_i32_1 = arith.constant 0 : i32
    return %arg1, %arg0, %c0_i32, %c0_i32_0 : i32, i32, i32, i32
  }
}

</mosaic_0001>

<llo_original>
// kernel: tpu_custom_call.1
$region0: #{tpu_custom_call.1}
  #allocation0 [shape = 'u32[]', space=smem, size = 0x4, offset = 0x4, fixed_abs, tag = 'smem constant byte address 0x4 - core index']
  #allocation1 [shape = 'u32[144,128]{1,0:T(1,128)}', space=vmem, size = 0x12000, scoped, tag = 'internal scratch']
  %s0 = inlined_call_operand.hbm [shape: f32[2,2,8,128], index: 0, kind: input, shape index: {}]
  %s1 = inlined_call_operand.hbm [shape: f32[2,8,128], index: 1, kind: input, shape index: {}]
  %s2 = inlined_call_operand.hbm [shape: f32[2,8,128], index: 2, kind: input, shape index: {}]
  %s3 = inlined_call_operand.hbm [shape: f32[2,2,8,128], index: 3, kind: output, shape index: {}]
  %s4 = sld [smem:[#allocation0]]
  $region34: #{tpu_custom_call.1} parent=0
    _
  %s6 = ssub.s32 1, %s4
  %s7 = scalar_select 0, %s6, %s4
  $region1: #{tpu_custom_call.1} parent=0
    #allocation2 [shape = 'u8[16384]{0}', space=vmem, size = 0x4000, scoped, tag = 'input window, operand 0, single buffered']
    #allocation3 [shape = 's32[1]{0}', space=sflag, size = 0x4, scoped, tag = 'scoped memory for tpu_custom_call.1']
    #allocation4 [shape = 's32[1]{0}', space=sflag, size = 0x4, scoped, tag = 'scoped memory for tpu_custom_call.1']
    #allocation5 [shape = 'u8[8192]{0}', space=vmem, size = 0x2000, scoped, tag = 'input window, operand 1, single buffered']
    #allocation6 [shape = 's32[1]{0}', space=sflag, size = 0x4, scoped, tag = 'scoped memory for tpu_custom_call.1']
    #allocation7 [shape = 'u8[8192]{0}', space=vmem, size = 0x2000, scoped, tag = 'input window, operand 2, single buffered']
    #allocation8 [shape = 'u8[16384]{0}', space=vmem, size = 0x4000, scoped, tag = 'output window, operand 0, single buffered']
    %8 = vsyncpa [#allocation3], 0
    %9 = vsyncpa [#allocation6], 0
    %10 = vsyncpa [#allocation4], 0
    // Predicated region
    $region2: #{tpu_custom_call.1} parent=1 // pred_check
      _
    $region3: #{tpu_custom_call.1} parent=1 // pred_check_branch
      %12 = sbr.rel (0) target = $region5
    $region4: #{tpu_custom_call.1} parent=1 // pred_region
      %s14 = ssub.s32 512, 512
      %15 = vsyncadd [#allocation3], %s14
      %s16 = sshll.u32 [#allocation2], 4
      %s17 = int_to_ptr.vmem [resolvable:$true] %s16
      %22 = dma.hbm_to_vmem [thread:$0]  %s0, 512, %s17, [#allocation3], 128, 128, 8
    $region5: #{tpu_custom_call.1} parent=1 // pred_fallthru
      _
    // Predicated region
    $region6: #{tpu_custom_call.1} parent=1 // pred_check
      _
    $region7: #{tpu_custom_call.1} parent=1 // pred_check_branch
      %24 = sbr.rel (0) target = $region9
    $region8: #{tpu_custom_call.1} parent=1 // pred_region
      %s26 = ssub.s32 256, 256
      %27 = vsyncadd [#allocation6], %s26
      %s28 = sshll.u32 [#allocation5], 4
      %s29 = int_to_ptr.vmem [resolvable:$true] %s28
      %34 = dma.hbm_to_vmem [thread:$0]  %s1, 256, %s29, [#allocation6], 128, 128, 8
    $region9: #{tpu_custom_call.1} parent=1 // pred_fallthru
      _
    // Predicated region
    $region10: #{tpu_custom_call.1} parent=1 // pred_check
      _
    $region11: #{tpu_custom_call.1} parent=1 // pred_check_branch
      %36 = sbr.rel (0) target = $region13
    $region12: #{tpu_custom_call.1} parent=1 // pred_region
      %s38 = ssub.s32 256, 256
      %39 = vsyncadd [#allocation6], %s38
      %s40 = sshll.u32 [#allocation7], 4
      %s41 = int_to_ptr.vmem [resolvable:$true] %s40
      %46 = dma.hbm_to_vmem [thread:$0]  %s2, 256, %s41, [#allocation6], 128, 128, 8
    $region13: #{tpu_custom_call.1} parent=1 // pred_fallthru
      _
    // Predicated region
    $region14: #{tpu_custom_call.1} parent=1 // pred_check
      _
    $region15: #{tpu_custom_call.1} parent=1 // pred_check_branch
      %48 = sbr.rel (0) target = $region17
    $region16: #{tpu_custom_call.1} parent=1 // pred_region
      %49 = dma.done [#allocation3], 512
    $region17: #{tpu_custom_call.1} parent=1 // pred_fallthru
      _
    // Predicated region
    $region18: #{tpu_custom_call.1} parent=1 // pred_check
      _
    $region19: #{tpu_custom_call.1} parent=1 // pred_check_branch
      %51 = sbr.rel (0) target = $region21
    $region20: #{tpu_custom_call.1} parent=1 // pred_region
      %52 = dma.done [#allocation6], 256
    $region21: #{tpu_custom_call.1} parent=1 // pred_fallthru
      _
    // Predicated region
    $region22: #{tpu_custom_call.1} parent=1 // pred_check
      _
    $region23: #{tpu_custom_call.1} parent=1 // pred_check_branch
      %54 = sbr.rel (0) target = $region25
    $region24: #{tpu_custom_call.1} parent=1 // pred_region
      %55 = dma.done [#allocation6], 256
    $region25: #{tpu_custom_call.1} parent=1 // pred_fallthru
      _
    %v56 = vld [vmem:[#allocation2] sm:$0xff]
    %v57 = vld [vmem:[#allocation2 + $0x8] sm:$0xff]
    %v58 = vld [vmem:[#allocation2 + $0x10] sm:$0xff]
    %v59 = vld [vmem:[#allocation2 + $0x18] sm:$0xff]
    %v60 = vrot.slane %v56, 4
    %v61 = vadd.f32 %v56, %v60
    %v62 = vrot.slane %v61, 2
    %v63 = vadd.f32 %v61, %v62
    %v64 = vrot.slane %v63, 1
    %v65 = vadd.f32 %v63, %v64
    %v66 = vrot.slane %v57, 4
    %v67 = vadd.f32 %v57, %v66
    %v68 = vrot.slane %v67, 2
    %v69 = vadd.f32 %v67, %v68
    %v70 = vrot.slane %v69, 1
    %v71 = vadd.f32 %v69, %v70
    %v72 = vrot.slane %v58, 4
    %v73 = vadd.f32 %v58, %v72
    %v74 = vrot.slane %v73, 2
    %v75 = vadd.f32 %v73, %v74
    %v76 = vrot.slane %v75, 1
    %v77 = vadd.f32 %v75, %v76
    %v78 = vrot.slane %v59, 4
    %v79 = vadd.f32 %v59, %v78
    %v80 = vrot.slane %v79, 2
    %v81 = vadd.f32 %v79, %v80
    %v82 = vrot.slane %v81, 1
    %v83 = vadd.f32 %v81, %v82
    %v84 = vmul.f32 %v56, %v56
    %v85 = vmul.f32 %v57, %v57
    %v86 = vmul.f32 %v58, %v58
    %v87 = vmul.f32 %v59, %v59
    %v88 = vrot.slane %v84, 4
    %v89 = vadd.f32 %v84, %v88
    %v90 = vrot.slane %v89, 2
    %v91 = vadd.f32 %v89, %v90
    %v92 = vrot.slane %v91, 1
    %v93 = vadd.f32 %v91, %v92
    %v94 = vrot.slane %v85, 4
    %v95 = vadd.f32 %v85, %v94
    %v96 = vrot.slane %v95, 2
    %v97 = vadd.f32 %v95, %v96
    %v98 = vrot.slane %v97, 1
    %v99 = vadd.f32 %v97, %v98
    %v100 = vrot.slane %v86, 4
    %v101 = vadd.f32 %v86, %v100
    %v102 = vrot.slane %v101, 2
    %v103 = vadd.f32 %v101, %v102
    %v104 = vrot.slane %v103, 1
    %v105 = vadd.f32 %v103, %v104
    %v106 = vrot.slane %v87, 4
    %v107 = vadd.f32 %v87, %v106
    %v108 = vrot.slane %v107, 2
    %v109 = vadd.f32 %v107, %v108
    %v110 = vrot.slane %v109, 1
    %v111 = vadd.f32 %v109, %v110
    %112 = vadd.xlane.f32.xlu0 %v65
    %v113 = vpop.xlane.xlu0 %112
    %114 = vadd.xlane.f32.xlu0 %v71
    %v115 = vpop.xlane.xlu0 %114
    %116 = vadd.xlane.f32.xlu0 %v77
    %v117 = vpop.xlane.xlu0 %116
    %118 = vadd.xlane.f32.xlu0 %v83
    %v119 = vpop.xlane.xlu0 %118
    %120 = vadd.xlane.f32.xlu0 %v93
    %v121 = vpop.xlane.xlu0 %120
    %122 = vadd.xlane.f32.xlu0 %v99
    %v123 = vpop.xlane.xlu0 %122
    %124 = vadd.xlane.f32.xlu0 %v105
    %v125 = vpop.xlane.xlu0 %124
    %126 = vadd.xlane.f32.xlu0 %v111
    %v127 = vpop.xlane.xlu0 %126
    %v128 = vmul.f32 %v113, 0.0009765625
    %v129 = vmul.f32 %v115, 0.0009765625
    %v130 = vmul.f32 %v117, 0.0009765625
    %v131 = vmul.f32 %v119, 0.0009765625
    %v132 = vmul.f32 %v113, %v128
    %v133 = vmul.f32 %v115, %v129
    %v134 = vmul.f32 %v117, %v130
    %v135 = vmul.f32 %v119, %v131
    %v136 = vsub.f32 %v121, %v132
    %v137 = vsub.f32 %v123, %v133
    %v138 = vsub.f32 %v125, %v134
    %v139 = vsub.f32 %v127, %v135
    %v140 = vmul.f32 %v136, 0.0009775171
    %v141 = vmul.f32 %v137, 0.0009775171
    %v142 = vmul.f32 %v138, 0.0009775171
    %v143 = vmul.f32 %v139, 0.0009775171
    %v144 = vadd.f32 %v140, 1e-05
    %v145 = vadd.f32 %v141, 1e-05
    %v146 = vadd.f32 %v142, 1e-05
    %v147 = vadd.f32 %v143, 1e-05
    %v148 = vrsqrt.pop %v144
    %v149 = vrsqrt.pop %v145
    %v150 = vrsqrt.pop %v146
    %v151 = vrsqrt.pop %v147
    %v152 = vld [vmem:[#allocation5] sm:$0xff]
    %v153 = vld [vmem:[#allocation5 + $0x8] sm:$0xff]
    %v154 = vld [vmem:[#allocation7] sm:$0xff]
    %v155 = vld [vmem:[#allocation7 + $0x8] sm:$0xff]
    %v156 = vsub.f32 %v56, %v128
    %v157 = vsub.f32 %v57, %v129
    %v158 = vsub.f32 %v58, %v130
    %v159 = vsub.f32 %v59, %v131
    %v160 = vmul.f32 %v152, %v148
    %v161 = vmul.f32 %v153, %v149
    %v162 = vmul.f32 %v152, %v150
    %v163 = vmul.f32 %v153, %v151
    %v164 = vmul.f32 %v156, %v160
    %v165 = vmul.f32 %v157, %v161
    %v166 = vmul.f32 %v158, %v162
    %v167 = vmul.f32 %v159, %v163
    %v168 = vadd.f32 %v164, %v154
    %v169 = vadd.f32 %v165, %v155
    %v170 = vadd.f32 %v166, %v154
    %v171 = vadd.f32 %v167, %v155
    %172 = vst [vmem:[#allocation8] sm:$0xff] %v168
    %173 = vst [vmem:[#allocation8 + $0x8] sm:$0xff] %v169
    %174 = vst [vmem:[#allocation8 + $0x10] sm:$0xff] %v170
    %175 = vst [vmem:[#allocation8 + $0x18] sm:$0xff] %v171
    // Predicated region
    $region26: #{tpu_custom_call.1} parent=1 // pred_check
      _
    $region27: #{tpu_custom_call.1} parent=1 // pred_check_branch
      %177 = sbr.rel (0) target = $region29
    $region28: #{tpu_custom_call.1} parent=1 // pred_region
      %s179 = ssub.s32 512, 512
      %180 = vsyncadd [#allocation4], %s179
      %s181 = sshll.u32 [#allocation8], 4
      %s182 = int_to_ptr.vmem [resolvable:$true] %s181
      %187 = dma.vmem_to_hbm [thread:$0]  %s182, 512, %s3, [#allocation4], 128, 128, 8
    $region29: #{tpu_custom_call.1} parent=1 // pred_fallthru
      _
    // Predicated region
    $region30: #{tpu_custom_call.1} parent=1 // pred_check
      _
    $region31: #{tpu_custom_call.1} parent=1 // pred_check_branch
      %189 = sbr.rel (0) target = $region33
    $region32: #{tpu_custom_call.1} parent=1 // pred_region
      %190 = dma.done [#allocation4], 512
    $region33: #{tpu_custom_call.1} parent=1 // pred_fallthru
      _
    %191 = vsyncpa [#allocation3], 1
    %192 = vsyncpa [#allocation6], 1
    %193 = vsyncpa [#allocation4], 1

</llo_original>
